<compile_context>
chip_gen: v5e
topology: v5e:2x2
jax: 0.10.0
libtpu: 0.0.40
codegen_flags: <defaults>
</compile_context>

<pallas_src>
import jax
import jax.numpy as jnp
import numpy as np
from jax.experimental import pallas as pl
from jax.experimental.pallas import tpu as pltpu


# ---------------------------------------------------------------------------
# hardware-aware knobs
# ---------------------------------------------------------------------------

def _derive_vmem_limit():
    """Scoped-VMEM request with headroom for compiler-internal scratch.

    v5e / v6e (128 MiB physical) -> 96 MiB ; v7x (64 MiB physical) -> 48 MiB.
    """
    try:
        cap = pltpu.get_tpu_info().vmem_capacity_bytes
    except Exception:
        cap = 64 * 1024 * 1024          # conservative fallback (v7x-sized)
    return min(int(cap) * 3 // 4, 110 * 1024 * 1024)


_VMEM_LIMIT = _derive_vmem_limit()


def _round_up(x, m):
    return ((x + m - 1) // m) * m


def _pick_token_tile(T):
    # bf16 activations pack 16 rows per vreg -> round token tiles to 16.
    # Bigger tiles when VMEM allows (v5e/v6e, 128 MiB parts) to amortize
    # per-step overhead and weight re-reads in the dense shared-expert MLP.
    target = 512 if _VMEM_LIMIT >= 96 * 1024 * 1024 else 256
    if T <= target:
        return _round_up(max(T, 1), 16)
    return target


def _pick_inner_tile(I, target=256):
    if I <= target:
        return I
    if I % target == 0:
        return target
    if I % 128 == 0:
        return 128
    return I


def _pick_group_tile(TK, E, cap=256):
    # Row tile of the gathered routed-expert matmul ~= expected tokens/expert,
    # so per-expert zero padding stays bounded by roughly one tile.
    avg = (TK + E - 1) // E
    return max(16, min(cap, _round_up(avg, 16)))


# ---------------------------------------------------------------------------
# weight packing (load-time): bf16 cast + chunk-interleaved gate/up fusion
# ---------------------------------------------------------------------------

def _fuse_gate_up(wg, wu, ti):
    """Columns [c*2*ti : (c+1)*2*ti] hold [gate chunk c | up chunk c]."""
    *lead, H, I = wg.shape
    n = I // ti
    wg_r = wg.reshape(*lead, H, n, ti)
    wu_r = wu.reshape(*lead, H, n, ti)
    return jnp.concatenate([wg_r, wu_r], axis=-1).reshape(*lead, H, 2 * I)


def pack_params(raw, ti_target=256):
    I = raw["experts_w_gate"].shape[2]
    I_sh = raw["shared_w_down"].shape[0]
    ti = _pick_inner_tile(I, ti_target)
    ti_sh = _pick_inner_tile(I_sh, ti_target)
    bf = jnp.bfloat16
    return {
        "gate_weight_t": raw["gate_weight_t"].astype(bf),
        "experts_w_gateup": _fuse_gate_up(
            raw["experts_w_gate"], raw["experts_w_up"], ti).astype(bf),
        "experts_w_down": raw["experts_w_down"].astype(bf),
        "shared_w_gateup": _fuse_gate_up(
            raw["shared_w_gate"], raw["shared_w_up"], ti_sh).astype(bf),
        "shared_w_down": raw["shared_w_down"].astype(bf),
    }


# ---------------------------------------------------------------------------
# Pallas kernels
# ---------------------------------------------------------------------------

def _gate_kernel(x_ref, wg_ref, o_ref):
    o_ref[...] = jnp.dot(
        x_ref[...], wg_ref[...], preferred_element_type=jnp.float32
    ).astype(o_ref.dtype)


def gate_logits(x, w_gate_t, *, tm):
    T, H = x.shape
    E = w_gate_t.shape[1]
    return pl.pallas_call(
        _gate_kernel,
        out_shape=jax.ShapeDtypeStruct((T, E), jnp.float32),
        grid=(T // tm,),
        in_specs=[
            pl.BlockSpec((tm, H), lambda t: (t, 0)),
            pl.BlockSpec((H, E), lambda t: (0, 0)),
        ],
        out_specs=pl.BlockSpec((tm, E), lambda t: (t, 0)),
        compiler_params=pltpu.CompilerParams(
            dimension_semantics=("parallel",),
            vmem_limit_bytes=_VMEM_LIMIT),
    )(x, w_gate_t)


def _mlp_kernel(x_ref, wgu_ref, wd_ref, o_ref, acc_ref):
    # SiluAndMul MLP, tiled over the intermediate dim (reduction axis = grid 1).
    c = pl.program_id(1)

    @pl.when(c == 0)
    def _():
        acc_ref[...] = jnp.zeros_like(acc_ref)

    x = x_ref[...]                                                     # (tm, H) bf16
    gu = jnp.dot(x, wgu_ref[...], preferred_element_type=jnp.float32)  # (tm, 2*ti)
    half = gu.shape[-1] // 2
    g = gu[:, :half]
    u = gu[:, half:]
    act = (g * jax.nn.sigmoid(g)) * u
    acc_ref[...] += jnp.dot(act.astype(x.dtype), wd_ref[...],
                            preferred_element_type=jnp.float32)

    @pl.when(c == pl.num_programs(1) - 1)
    def _():
        o_ref[...] = acc_ref[...].astype(o_ref.dtype)


def shared_expert_mlp(x, w_gateup, w_down, *, tm, ti):
    T, H = x.shape
    I = w_down.shape[0]
    return pl.pallas_call(
        _mlp_kernel,
        # bf16 output halves the (T, H) HBM round trip (feedback item).
        out_shape=jax.ShapeDtypeStruct((T, H), jnp.bfloat16),
        grid=(T // tm, I // ti),
        in_specs=[
            pl.BlockSpec((tm, H), lambda t, c: (t, 0)),
            pl.BlockSpec((H, 2 * ti), lambda t, c: (0, c)),
            pl.BlockSpec((ti, H), lambda t, c: (c, 0)),
        ],
        out_specs=pl.BlockSpec((tm, H), lambda t, c: (t, 0)),
        scratch_shapes=[pltpu.VMEM((tm, H), jnp.float32)],
        compiler_params=pltpu.CompilerParams(
            dimension_semantics=("parallel", "arbitrary"),
            vmem_limit_bytes=_VMEM_LIMIT),
    )(x, w_gateup, w_down)


def _routed_kernel(tile_row_ref, tile_expert_ref, nact_ref,
                   x_ref, w_ref, wgu_ref, wd_ref, o_ref, acc_ref):
    # grid = (row_tiles, intermediate_chunks). Each row tile holds one expert's
    # gathered tokens (group-padded). Inactive tiles (i >= n_active) are fully
    # skipped and their input DMAs are elided via repeated block indices.
    i = pl.program_id(0)
    c = pl.program_id(1)
    nc = pl.num_programs(1)
    valid = i < nact_ref[0]

    @pl.when(jnp.logical_and(valid, c == 0))
    def _():
        acc_ref[...] = jnp.zeros_like(acc_ref)

    @pl.when(valid)
    def _():
        x = x_ref[...]                                                   # (tg, H) bf16
        gu = jnp.dot(x, wgu_ref[...], preferred_element_type=jnp.float32)  # (tg, 2*ti)
        half = gu.shape[-1] // 2
        g = gu[:, :half]
        u = gu[:, half:]
        act = (g * jax.nn.sigmoid(g)) * u                                # (tg, ti) f32
        # Per-row routing weight (routed_scaling_factor pre-folded); scaling the
        # (tg, ti) activation is cheaper than scaling the (tg, H) result.
        act = (act * w_ref[...]).astype(x.dtype)
        acc_ref[...] += jnp.dot(act, wd_ref[...],
                                preferred_element_type=jnp.float32)

    @pl.when(jnp.logical_and(valid, c == nc - 1))
    def _():
        o_ref[...] = acc_ref[...].astype(o_ref.dtype)


def routed_experts(x_sorted, w_sorted, w_gateup, w_down,
                   tile_row, tile_expert, n_act, *, tg, ti):
    G, H = x_sorted.shape
    I = w_down.shape[1]
    n_tiles = G // tg
    n_chunks = I // ti
    last_c = n_chunks - 1

    # For inactive tiles the chunk index is pinned to last_c so the weight DMA
    # for the inactive tail is elided as well (block index never changes).
    def _chunk(i, c, na):
        return jnp.where(i < na[0], c, last_c)

    grid_spec = pltpu.PrefetchScalarGridSpec(
        num_scalar_prefetch=3,
        grid=(n_tiles, n_chunks),
        in_specs=[
            pl.BlockSpec((tg, H), lambda i, c, trow, texp, na: (trow[i], 0)),
            pl.BlockSpec((tg, 1), lambda i, c, trow, texp, na: (trow[i], 0)),
            pl.BlockSpec(
                (pl.Squeezed(), H, 2 * ti),
                lambda i, c, trow, texp, na: (texp[i], 0, _chunk(i, c, na))),
            pl.BlockSpec(
                (pl.Squeezed(), ti, H),
                lambda i, c, trow, texp, na: (texp[i], _chunk(i, c, na), 0)),
        ],
        out_specs=pl.BlockSpec((tg, H), lambda i, c, trow, texp, na: (trow[i], 0)),
        scratch_shapes=[pltpu.VMEM((tg, H), jnp.float32)],
    )
    return pl.pallas_call(
        _routed_kernel,
        out_shape=jax.ShapeDtypeStruct((G, H), jnp.float32),
        grid_spec=grid_spec,
        compiler_params=pltpu.CompilerParams(
            # Row-tile axis must stay "arbitrary": inactive tiles alias the last
            # active tile's output block (their writes/DMAs are elided).
            # TODO(synk): on v7x split the chunk axis across the 2 TensorCores
            # (core_map + partial accumulators) for 1-token decode.
            dimension_semantics=("arbitrary", "arbitrary"),
            vmem_limit_bytes=_VMEM_LIMIT),
    )(tile_row, tile_expert, n_act, x_sorted, w_sorted, w_gateup, w_down)


# ---------------------------------------------------------------------------
# Routing glue (grouped top-k, softmax scoring, no correction bias)
# ---------------------------------------------------------------------------

def grouped_topk(router_logits, top_k, num_expert_group, topk_group, renormalize):
    scores = jax.nn.softmax(router_logits.astype(jnp.float32), axis=-1)   # (T, E)
    T, E = scores.shape
    experts_per_group = E // num_expert_group
    group_scores = scores.reshape(T, num_expert_group, experts_per_group).max(axis=-1)
    _, group_idx = jax.lax.top_k(group_scores, topk_group)                # (T, Gk)
    group_mask = jnp.zeros((T, num_expert_group), jnp.float32).at[
        jnp.arange(T)[:, None], group_idx
    ].set(1.0)
    score_mask = jnp.repeat(group_mask, experts_per_group, axis=1)        # (T, E)
    tmp_scores = jnp.where(score_mask > 0, scores, 0.0)
    topk_w, topk_ids = jax.lax.top_k(tmp_scores, top_k)
    if renormalize:
        topk_w = topk_w / jnp.sum(topk_w, axis=-1, keepdims=True)
    return topk_w, topk_ids


def build_dispatch(x_bf, topk_w, topk_ids, num_experts, tg, scaling):
    """Megablocks-style dispatch: sort dispatch slots by expert, pad each
    expert group to a multiple of tg, and build the scalar-prefetch metadata
    driving the routed-expert kernel."""
    T, K = topk_ids.shape
    TK = T * K
    H = x_bf.shape[1]
    E = num_experts

    flat_e = topk_ids.reshape(-1).astype(jnp.int32)
    flat_w = (topk_w.astype(jnp.float32) * scaling).reshape(-1)
    flat_tok = jnp.arange(TK, dtype=jnp.int32) // K

    order = jnp.argsort(flat_e)
    sorted_e = flat_e[order]
    sorted_w = flat_w[order]
    sorted_tok = flat_tok[order]

    counts = jnp.bincount(flat_e, length=E).astype(jnp.int32)
    padded_counts = ((counts + tg - 1) // tg) * tg
    cum_pad = jnp.cumsum(padded_counts).astype(jnp.int32)
    cum_raw = jnp.cumsum(counts).astype(jnp.int32)
    start_pad = cum_pad - padded_counts
    start_raw = cum_raw - counts

    ranks = jnp.arange(TK, dtype=jnp.int32) - start_raw[sorted_e]
    dest_row = start_pad[sorted_e] + ranks

    # Static upper bound on the padded row count (shapes must be static).
    G_max = _round_up(TK + min(E, TK) * (tg - 1), tg)
    n_tiles_max = G_max // tg
    padded_total = cum_pad[-1]
    n_tiles_active = (padded_total // tg).astype(jnp.int32)

    # Gathered (expert-sorted, group-padded) activations / routing weights.
    x_sorted = jnp.zeros((G_max, H), x_bf.dtype).at[dest_row].set(x_bf[sorted_tok])
    w_sorted = jnp.zeros((G_max, 1), jnp.float32).at[dest_row, 0].set(sorted_w)
    # Pad rows map out of range -> dropped by the combine scatter.
    combine_tok = jnp.full((G_max,), T, jnp.int32).at[dest_row].set(sorted_tok)

    # Per-tile metadata (SMEM scalar prefetch). Inactive tiles repeat the last
    # active tile's indices so their input DMAs are elided by the pipeline.
    tile_ids = jnp.arange(n_tiles_max, dtype=jnp.int32)
    valid = tile_ids < n_tiles_active
    last = jnp.maximum(n_tiles_active - 1, 0)
    tile_expert_raw = jnp.minimum(
        jnp.searchsorted(cum_pad, tile_ids * tg, side="right"), E - 1
    ).astype(jnp.int32)
    tile_expert = jnp.where(valid, tile_expert_raw, tile_expert_raw[last])
    tile_row = jnp.where(valid, tile_ids, last)
    n_act = n_tiles_active.reshape((1,))

    return x_sorted, w_sorted, combine_tok, tile_row, tile_expert, n_act


# ---------------------------------------------------------------------------
# DeepseekV2MoE forward (forward_normal path)
# ---------------------------------------------------------------------------

def deepseek_v2_moe_forward(hidden_states, params, cfg):
    # TODO(synk): tensor-parallel all-reduce (tp_size > 1) and the deepep EP
    # dispatch/combine paths are multi-device collectives not modeled here.
    T, H = hidden_states.shape
    E = cfg["n_routed_experts"]
    K = cfg["num_experts_per_tok"]
    I = params["experts_w_down"].shape[1]
    I_sh = params["shared_w_down"].shape[0]

    tm = _pick_token_tile(T)
    ti = _pick_inner_tile(I)
    ti_sh = _pick_inner_tile(I_sh)
    tg = _pick_group_tile(T * K, E)
    T_pad = _round_up(T, tm)

    x = hidden_states.astype(jnp.bfloat16)
    x_p = jnp.pad(x, ((0, T_pad - T), (0, 0))) if T_pad != T else x

    # Shared experts (dense SiluAndMul MLP over all tokens).
    shared_out = shared_expert_mlp(
        x_p, params["shared_w_gateup"], params["shared_w_down"],
        tm=tm, ti=ti_sh)[:T]

    # Router + grouped top-k.
    router_logits = gate_logits(x_p, params["gate_weight_t"], tm=tm)[:T]
    topk_w, topk_ids = grouped_topk(
        router_logits,
        top_k=K,
        num_expert_group=cfg["n_group"],
        topk_group=cfg["topk_group"],
        renormalize=cfg["norm_topk_prob"],
    )

    # Megablocks-style dispatch: routed compute scales with top_k*T, and each
    # active expert's weights are streamed from HBM ~once (not once per token
    # tile, not at all for inactive experts).
    x_sorted, w_sorted, combine_tok, tile_row, tile_expert, n_act = build_dispatch(
        x, topk_w, topk_ids, E, tg, cfg["routed_scaling_factor"])

    routed_rows = routed_experts(
        x_sorted, w_sorted,
        params["experts_w_gateup"], params["experts_w_down"],
        tile_row, tile_expert, n_act, tg=tg, ti=ti)

    # Combine: scatter-add per-slot outputs back to tokens; add shared experts.
    routed = jnp.zeros((T, H), jnp.float32).at[combine_tok].add(
        routed_rows, mode="drop")
    return routed + shared_out.astype(jnp.float32)


# ---------------------------------------------------------------------------
# Plain-JAX reference (dense over experts) for correctness checking
# ---------------------------------------------------------------------------

def reference_forward(hidden_states, raw, cfg):
    f32 = jnp.float32
    x = hidden_states.astype(jnp.bfloat16).astype(f32)

    def bf(w):
        return w.astype(jnp.bfloat16).astype(f32)

    def mlp(xx, wg, wu, wd):
        g = xx @ bf(wg)
        u = xx @ bf(wu)
        return (g * jax.nn.sigmoid(g) * u) @ bf(wd)

    shared = mlp(x, raw["shared_w_gate"], raw["shared_w_up"], raw["shared_w_down"])
    logits = x @ bf(raw["gate_weight_t"])
    topk_w, topk_ids = grouped_topk(
        logits, cfg["num_experts_per_tok"], cfg["n_group"],
        cfg["topk_group"], cfg["norm_topk_prob"])
    E = cfg["n_routed_experts"]
    T = x.shape[0]
    rw = jnp.zeros((T, E), f32).at[
        jnp.arange(T)[:, None], topk_ids].add(topk_w)
    rw = rw * cfg["routed_scaling_factor"]
    routed = jnp.zeros_like(shared)
    for e in range(E):
        ye = mlp(x, raw["experts_w_gate"][e], raw["experts_w_up"][e],
                 raw["experts_w_down"][e])
        routed = routed + rw[:, e:e + 1] * ye
    return routed + shared


# ---------------------------------------------------------------------------
# Main
# ---------------------------------------------------------------------------

if __name__ == "__main__":
    cfg = dict(
        hidden_size=32,
        moe_intermediate_size=16,
        n_routed_experts=8,
        n_group=4,
        topk_group=2,
        num_experts_per_tok=2,
        n_shared_experts=2,
        norm_topk_prob=True,
        routed_scaling_factor=2.0,
    )
    T = 8
    H = cfg["hidden_size"]
    I = cfg["moe_intermediate_size"]
    E = cfg["n_routed_experts"]
    I_sh = I * cfg["n_shared_experts"]

    key = jax.random.PRNGKey(0)
    ks = jax.random.split(key, 8)
    scale = 0.05
    raw_params = {
        # MoEGate: weight (E, H) in torch; stored transposed for x @ W
        "gate_weight_t": scale * jax.random.normal(ks[0], (H, E), jnp.float32),
        # routed experts (gate_up split into gate / up halves)
        "experts_w_gate": scale * jax.random.normal(ks[1], (E, H, I), jnp.float32),
        "experts_w_up":   scale * jax.random.normal(ks[2], (E, H, I), jnp.float32),
        "experts_w_down": scale * jax.random.normal(ks[3], (E, I, H), jnp.float32),
        # shared experts MLP (intermediate = moe_intermediate_size * n_shared_experts)
        "shared_w_gate": scale * jax.random.normal(ks[4], (H, I_sh), jnp.float32),
        "shared_w_up":   scale * jax.random.normal(ks[5], (H, I_sh), jnp.float32),
        "shared_w_down": scale * jax.random.normal(ks[6], (I_sh, H), jnp.float32),
    }
    params = pack_params(raw_params)
    hidden_states = jax.random.normal(ks[7], (T, H), jnp.float32)

    fwd = jax.jit(lambda h: deepseek_v2_moe_forward(h, params, cfg))
    out = fwd(hidden_states)
    jax.block_until_ready(out)
    assert out.shape == (T, H) and out.dtype == jnp.float32

    ref = reference_forward(hidden_states, raw_params, cfg)
    np.testing.assert_allclose(np.asarray(out), np.asarray(ref),
                               rtol=5e-2, atol=5e-3)
    print("KERNEL_OK")
</pallas_src>

<mosaic_0001>
module attributes {stable_mosaic.version = 11 : i64} {
  func.func @_gate_kernel(%arg0: i32, %arg1: memref<16x32xbf16, #tpu.memory_space<vmem>>, %arg2: memref<32x8xbf16, #tpu.memory_space<vmem>>, %arg3: memref<16x8xf32, #tpu.memory_space<vmem>>) attributes {dimension_semantics = [#tpu.dimension_semantics<parallel>], iteration_bounds = array<i64: 1>, scalar_prefetch = 0 : i64, scratch_operands = 0 : i64, tpu.core_type = #tpu.core_type<tc>, window_params = [{transform_indices = @transform_0, window_bounds = array<i64: 16, 32>}, {pipeline_mode = #tpu.pipeline_mode<synchronous>, transform_indices = @transform_1, window_bounds = array<i64: 32, 8>}, {transform_indices = @transform_2, window_bounds = array<i64: 16, 8>}]} {
    %c0 = arith.constant 0 : index
    %c0_0 = arith.constant 0 : index
    %0 = vector.load %arg1[%c0, %c0_0] : memref<16x32xbf16, #tpu.memory_space<vmem>>, vector<16x32xbf16>
    %c0_1 = arith.constant 0 : index
    %c0_2 = arith.constant 0 : index
    %1 = vector.load %arg2[%c0_1, %c0_2] : memref<32x8xbf16, #tpu.memory_space<vmem>>, vector<32x8xbf16>
    %cst = arith.constant dense<0.000000e+00> : vector<16x8xf32>
    %2 = tpu.matmul %0, %1, %cst {dimension_numbers = #tpu.dot_dimension_numbers<[1], [0], [0], [1], [0, 0, 1, 1], [], []>} : vector<16x32xbf16>, vector<32x8xbf16>, vector<16x8xf32> -> vector<16x8xf32>
    %c0_3 = arith.constant 0 : index
    %c0_4 = arith.constant 0 : index
    %3 = vector.load %arg3[%c0_3, %c0_4] : memref<16x8xf32, #tpu.memory_space<vmem>>, vector<16x8xf32>
    tpu.vector_store %arg3[%c0_3, %c0_4], %2 {strides = array<i32>} : memref<16x8xf32, #tpu.memory_space<vmem>>, vector<16x8xf32>,
    return
  }
  func.func @transform_0(%arg0: i32) -> (i32, i32) {
    %c0_i32 = arith.constant 0 : i32
    %c0_i32_0 = arith.constant 0 : i32
    return %arg0, %c0_i32 : i32, i32
  }
  func.func @transform_1(%arg0: i32) -> (i32, i32) {
    %c0_i32 = arith.constant 0 : i32
    %c0_i32_0 = arith.constant 0 : i32
    %c0_i32_1 = arith.constant 0 : i32
    return %c0_i32, %c0_i32_0 : i32, i32
  }
  func.func @transform_2(%arg0: i32) -> (i32, i32) {
    %c0_i32 = arith.constant 0 : i32
    %c0_i32_0 = arith.constant 0 : i32
    return %arg0, %c0_i32 : i32, i32
  }
}

module attributes {stable_mosaic.version = 11 : i64} {
  func.func @_mlp_kernel(%arg0: i32, %arg1: i32, %arg2: memref<16x32xbf16, #tpu.memory_space<vmem>>, %arg3: memref<32x64xbf16, #tpu.memory_space<vmem>>, %arg4: memref<32x32xbf16, #tpu.memory_space<vmem>>, %arg5: memref<16x32xbf16, #tpu.memory_space<vmem>>, %arg6: memref<16x32xf32, #tpu.memory_space<vmem>>) attributes {dimension_semantics = [#tpu.dimension_semantics<parallel>, #tpu.dimension_semantics<arbitrary>], iteration_bounds = array<i64: 1, 1>, scalar_prefetch = 0 : i64, scratch_operands = 1 : i64, tpu.core_type = #tpu.core_type<tc>, window_params = [{transform_indices = @transform_0, window_bounds = array<i64: 16, 32>}, {transform_indices = @transform_1, window_bounds = array<i64: 32, 64>}, {transform_indices = @transform_2, window_bounds = array<i64: 32, 32>}, {transform_indices = @transform_3, window_bounds = array<i64: 16, 32>}]} {
    %c0_i32 = arith.constant 0 : i32
    %0 = arith.cmpi eq, %arg1, %c0_i32 : i32
    %1 = arith.extui %0 : i1 to i32
    %c0_i32_0 = arith.constant 0 : i32
    %2 = arith.cmpi ne, %1, %c0_i32_0 : i32
    scf.if %2 {
      %cst_14 = arith.constant 0.000000e+00 : f32
      %24 = vector.broadcast %cst_14 : f32 to vector<16x32xf32>
      %c0_15 = arith.constant 0 : index
      %c0_16 = arith.constant 0 : index
      %25 = vector.load %arg6[%c0_15, %c0_16] : memref<16x32xf32, #tpu.memory_space<vmem>>, vector<16x32xf32>
      tpu.vector_store %arg6[%c0_15, %c0_16], %24 {strides = array<i32>} : memref<16x32xf32, #tpu.memory_space<vmem>>, vector<16x32xf32>,
    } else {
    }
    %c0 = arith.constant 0 : index
    %c0_1 = arith.constant 0 : index
    %3 = vector.load %arg2[%c0, %c0_1] : memref<16x32xbf16, #tpu.memory_space<vmem>>, vector<16x32xbf16>
    %c0_2 = arith.constant 0 : index
    %c0_3 = arith.constant 0 : index
    %4 = vector.load %arg3[%c0_2, %c0_3] : memref<32x64xbf16, #tpu.memory_space<vmem>>, vector<32x64xbf16>
    %cst = arith.constant dense<0.000000e+00> : vector<16x64xf32>
    %5 = tpu.matmul %3, %4, %cst {dimension_numbers = #tpu.dot_dimension_numbers<[1], [0], [0], [1], [0, 0, 1, 1], [], []>} : vector<16x32xbf16>, vector<32x64xbf16>, vector<16x64xf32> -> vector<16x64xf32>
    %6 = vector.extract_strided_slice %5 {offsets = [0, 0], sizes = [16, 32], strides = [1, 1]} : vector<16x64xf32> to vector<16x32xf32>
    %7 = vector.extract_strided_slice %5 {offsets = [0, 32], sizes = [16, 32], strides = [1, 1]} : vector<16x64xf32> to vector<16x32xf32>
    %8 = arith.negf %6 : vector<16x32xf32>
    %9 = math.exp %8 : vector<16x32xf32>
    %cst_4 = arith.constant 1.000000e+00 : f32
    %10 = vector.broadcast %cst_4 : f32 to vector<16x32xf32>
    %11 = arith.addf %10, %9 : vector<16x32xf32>
    %12 = arith.divf %10, %11 : vector<16x32xf32>
    %13 = arith.mulf %6, %12 : vector<16x32xf32>
    %14 = arith.mulf %13, %7 : vector<16x32xf32>
    %c0_5 = arith.constant 0 : index
    %c0_6 = arith.constant 0 : index
    %15 = vector.load %arg6[%c0_5, %c0_6] : memref<16x32xf32, #tpu.memory_space<vmem>>, vector<16x32xf32>
    %16 = arith.truncf %14 : vector<16x32xf32> to vector<16x32xbf16>
    %c0_7 = arith.constant 0 : index
    %c0_8 = arith.constant 0 : index
    %17 = vector.load %arg4[%c0_7, %c0_8] : memref<32x32xbf16, #tpu.memory_space<vmem>>, vector<32x32xbf16>
    %cst_9 = arith.constant dense<0.000000e+00> : vector<16x32xf32>
    %18 = tpu.matmul %16, %17, %cst_9 {dimension_numbers = #tpu.dot_dimension_numbers<[1], [0], [0], [1], [0, 0, 1, 1], [], []>} : vector<16x32xbf16>, vector<32x32xbf16>, vector<16x32xf32> -> vector<16x32xf32>
    %19 = arith.addf %15, %18 : vector<16x32xf32>
    %c0_10 = arith.constant 0 : index
    %c0_11 = arith.constant 0 : index
    %20 = vector.load %arg6[%c0_10, %c0_11] : memref<16x32xf32, #tpu.memory_space<vmem>>, vector<16x32xf32>
    tpu.vector_store %arg6[%c0_10, %c0_11], %19 {strides = array<i32>} : memref<16x32xf32, #tpu.memory_space<vmem>>, vector<16x32xf32>,
    %c0_i32_12 = arith.constant 0 : i32
    %21 = arith.cmpi eq, %arg1, %c0_i32_12 : i32
    %22 = arith.extui %21 : i1 to i32
    %c0_i32_13 = arith.constant 0 : i32
    %23 = arith.cmpi ne, %22, %c0_i32_13 : i32
    scf.if %23 {
      %c0_14 = arith.constant 0 : index
      %c0_15 = arith.constant 0 : index
      %24 = vector.load %arg6[%c0_14, %c0_15] : memref<16x32xf32, #tpu.memory_space<vmem>>, vector<16x32xf32>
      %25 = arith.truncf %24 : vector<16x32xf32> to vector<16x32xbf16>
      %c0_16 = arith.constant 0 : index
      %c0_17 = arith.constant 0 : index
      %26 = vector.load %arg5[%c0_16, %c0_17] : memref<16x32xbf16, #tpu.memory_space<vmem>>, vector<16x32xbf16>
      tpu.vector_store %arg5[%c0_16, %c0_17], %25 {strides = array<i32>} : memref<16x32xbf16, #tpu.memory_space<vmem>>, vector<16x32xbf16>,
    } else {
    }
    return
  }
  func.func @transform_0(%arg0: i32, %arg1: i32) -> (i32, i32) {
    %c0_i32 = arith.constant 0 : i32
    %c0_i32_0 = arith.constant 0 : i32
    return %arg0, %c0_i32 : i32, i32
  }
  func.func @transform_1(%arg0: i32, %arg1: i32) -> (i32, i32) {
    %c0_i32 = arith.constant 0 : i32
    %c0_i32_0 = arith.constant 0 : i32
    return %c0_i32, %arg1 : i32, i32
  }
  func.func @transform_2(%arg0: i32, %arg1: i32) -> (i32, i32) {
    %c0_i32 = arith.constant 0 : i32
    %c0_i32_0 = arith.constant 0 : i32
    return %arg1, %c0_i32 : i32, i32
  }
  func.func @transform_3(%arg0: i32, %arg1: i32) -> (i32, i32) {
    %c0_i32 = arith.constant 0 : i32
    %c0_i32_0 = arith.constant 0 : i32
    return %arg0, %c0_i32 : i32, i32
  }
}

module attributes {stable_mosaic.version = 11 : i64} {
  func.func @_routed_kernel(%arg0: i32, %arg1: i32, %arg2: memref<9xi32, #tpu.memory_space<smem>>, %arg3: memref<9xi32, #tpu.memory_space<smem>>, %arg4: memref<1xi32, #tpu.memory_space<smem>>, %arg5: memref<16x32xbf16, #tpu.memory_space<vmem>>, %arg6: memref<16x1xf32, #tpu.memory_space<vmem>>, %arg7: memref<1x32x32xbf16, #tpu.memory_space<vmem>>, %arg8: memref<1x16x32xbf16, #tpu.memory_space<vmem>>, %arg9: memref<16x32xf32, #tpu.memory_space<vmem>>, %arg10: memref<16x32xf32, #tpu.memory_space<vmem>>) attributes {dimension_semantics = [#tpu.dimension_semantics<arbitrary>, #tpu.dimension_semantics<arbitrary>], iteration_bounds = array<i64: 9, 1>, scalar_prefetch = 3 : i64, scratch_operands = 1 : i64, tpu.core_type = #tpu.core_type<tc>, window_params = [{transform_indices = @transform_0, window_bounds = array<i64: 16, 32>}, {transform_indices = @transform_1, window_bounds = array<i64: 16, 1>}, {transform_indices = @transform_2, window_bounds = array<i64: 1, 32, 32>}, {transform_indices = @transform_3, window_bounds = array<i64: 1, 16, 32>}, {transform_indices = @transform_4, window_bounds = array<i64: 16, 32>}]} {
    %c0 = arith.constant 0 : index
    %0 = memref.load %arg4[%c0] : memref<1xi32, #tpu.memory_space<smem>>
    %1 = arith.cmpi slt, %arg0, %0 : i32
    %c0_i32 = arith.constant 0 : i32
    %2 = arith.cmpi eq, %arg1, %c0_i32 : i32
    %3 = arith.andi %1, %2 : i1
    %4 = arith.extui %3 : i1 to i32
    %c0_i32_0 = arith.constant 0 : i32
    %5 = arith.cmpi ne, %4, %c0_i32_0 : i32
    scf.if %5 {
      %cst = arith.constant 0.000000e+00 : f32
      %12 = vector.broadcast %cst : f32 to vector<16x32xf32>
      %c0_4 = arith.constant 0 : index
      %c0_5 = arith.constant 0 : index
      %13 = vector.load %arg10[%c0_4, %c0_5] : memref<16x32xf32, #tpu.memory_space<vmem>>, vector<16x32xf32>
      tpu.vector_store %arg10[%c0_4, %c0_5], %12 {strides = array<i32>} : memref<16x32xf32, #tpu.memory_space<vmem>>, vector<16x32xf32>,
    } else {
    }
    %6 = arith.extui %1 : i1 to i32
    %c0_i32_1 = arith.constant 0 : i32
    %7 = arith.cmpi ne, %6, %c0_i32_1 : i32
    scf.if %7 {
      %c0_4 = arith.constant 0 : index
      %c0_5 = arith.constant 0 : index
      %12 = vector.load %arg5[%c0_4, %c0_5] : memref<16x32xbf16, #tpu.memory_space<vmem>>, vector<16x32xbf16>
      %c0_6 = arith.constant 0 : index
      %c0_7 = arith.constant 0 : index
      %c0_8 = arith.constant 0 : index
      %13 = vector.load %arg7[%c0_6, %c0_7, %c0_8] : memref<1x32x32xbf16, #tpu.memory_space<vmem>>, vector<1x32x32xbf16>
      %14 = vector.shape_cast %13 : vector<1x32x32xbf16> to vector<32x32xbf16>
      %cst = arith.constant dense<0.000000e+00> : vector<16x32xf32>
      %15 = tpu.matmul %12, %14, %cst {dimension_numbers = #tpu.dot_dimension_numbers<[1], [0], [0], [1], [0, 0, 1, 1], [], []>} : vector<16x32xbf16>, vector<32x32xbf16>, vector<16x32xf32> -> vector<16x32xf32>
      %16 = vector.extract_strided_slice %15 {offsets = [0, 0], sizes = [16, 16], strides = [1, 1]} : vector<16x32xf32> to vector<16x16xf32>
      %17 = vector.extract_strided_slice %15 {offsets = [0, 16], sizes = [16, 16], strides = [1, 1]} : vector<16x32xf32> to vector<16x16xf32>
      %18 = arith.negf %16 : vector<16x16xf32>
      %19 = math.exp %18 : vector<16x16xf32>
      %cst_9 = arith.constant 1.000000e+00 : f32
      %20 = vector.broadcast %cst_9 : f32 to vector<16x16xf32>
      %21 = arith.addf %20, %19 : vector<16x16xf32>
      %22 = arith.divf %20, %21 : vector<16x16xf32>
      %23 = arith.mulf %16, %22 : vector<16x16xf32>
      %24 = arith.mulf %23, %17 : vector<16x16xf32>
      %c0_10 = arith.constant 0 : index
      %c0_11 = arith.constant 0 : index
      %25 = vector.load %arg6[%c0_10, %c0_11] : memref<16x1xf32, #tpu.memory_space<vmem>>, vector<16x1xf32>
      %26 = vector.broadcast %25 : vector<16x1xf32> to vector<16x16xf32>
      %27 = arith.mulf %24, %26 : vector<16x16xf32>
      %28 = arith.truncf %27 : vector<16x16xf32> to vector<16x16xbf16>
      %c0_12 = arith.constant 0 : index
      %c0_13 = arith.constant 0 : index
      %29 = vector.load %arg10[%c0_12, %c0_13] : memref<16x32xf32, #tpu.memory_space<vmem>>, vector<16x32xf32>
      %c0_14 = arith.constant 0 : index
      %c0_15 = arith.constant 0 : index
      %c0_16 = arith.constant 0 : index
      %30 = vector.load %arg8[%c0_14, %c0_15, %c0_16] : memref<1x16x32xbf16, #tpu.memory_space<vmem>>, vector<1x16x32xbf16>
      %31 = vector.shape_cast %30 : vector<1x16x32xbf16> to vector<16x32xbf16>
      %cst_17 = arith.constant dense<0.000000e+00> : vector<16x32xf32>
      %32 = tpu.matmul %28, %31, %cst_17 {dimension_numbers = #tpu.dot_dimension_numbers<[1], [0], [0], [1], [0, 0, 1, 1], [], []>} : vector<16x16xbf16>, vector<16x32xbf16>, vector<16x32xf32> -> vector<16x32xf32>
      %33 = arith.addf %29, %32 : vector<16x32xf32>
      %c0_18 = arith.constant 0 : index
      %c0_19 = arith.constant 0 : index
      %34 = vector.load %arg10[%c0_18, %c0_19] : memref<16x32xf32, #tpu.memory_space<vmem>>, vector<16x32xf32>
      tpu.vector_store %arg10[%c0_18, %c0_19], %33 {strides = array<i32>} : memref<16x32xf32, #tpu.memory_space<vmem>>, vector<16x32xf32>,
    } else {
    }
    %c0_i32_2 = arith.constant 0 : i32
    %8 = arith.cmpi eq, %arg1, %c0_i32_2 : i32
    %9 = arith.andi %1, %8 : i1
    %10 = arith.extui %9 : i1 to i32
    %c0_i32_3 = arith.constant 0 : i32
    %11 = arith.cmpi ne, %10, %c0_i32_3 : i32
    scf.if %11 {
      %c0_4 = arith.constant 0 : index
      %c0_5 = arith.constant 0 : index
      %12 = vector.load %arg10[%c0_4, %c0_5] : memref<16x32xf32, #tpu.memory_space<vmem>>, vector<16x32xf32>
      %c0_6 = arith.constant 0 : index
      %c0_7 = arith.constant 0 : index
      %13 = vector.load %arg9[%c0_6, %c0_7] : memref<16x32xf32, #tpu.memory_space<vmem>>, vector<16x32xf32>
      tpu.vector_store %arg9[%c0_6, %c0_7], %12 {strides = array<i32>} : memref<16x32xf32, #tpu.memory_space<vmem>>, vector<16x32xf32>,
    } else {
    }
    return
  }
  func.func @transform_0(%arg0: i32, %arg1: i32, %arg2: memref<9xi32, #tpu.memory_space<smem>>, %arg3: memref<9xi32, #tpu.memory_space<smem>>, %arg4: memref<1xi32, #tpu.memory_space<smem>>) -> (i32, i32) {
    %0 = arith.index_cast %arg0 : i32 to index
    %1 = memref.load %arg2[%0] : memref<9xi32, #tpu.memory_space<smem>>
    %c0_i32 = arith.constant 0 : i32
    %c0_i32_0 = arith.constant 0 : i32
    return %1, %c0_i32 : i32, i32
  }
  func.func @transform_1(%arg0: i32, %arg1: i32, %arg2: memref<9xi32, #tpu.memory_space<smem>>, %arg3: memref<9xi32, #tpu.memory_space<smem>>, %arg4: memref<1xi32, #tpu.memory_space<smem>>) -> (i32, i32) {
    %0 = arith.index_cast %arg0 : i32 to index
    %1 = memref.load %arg2[%0] : memref<9xi32, #tpu.memory_space<smem>>
    %c0_i32 = arith.constant 0 : i32
    %c0_i32_0 = arith.constant 0 : i32
    return %1, %c0_i32 : i32, i32
  }
  func.func @transform_2(%arg0: i32, %arg1: i32, %arg2: memref<9xi32, #tpu.memory_space<smem>>, %arg3: memref<9xi32, #tpu.memory_space<smem>>, %arg4: memref<1xi32, #tpu.memory_space<smem>>) -> (i32, i32, i32) {
    %0 = arith.index_cast %arg0 : i32 to index
    %1 = memref.load %arg3[%0] : memref<9xi32, #tpu.memory_space<smem>>
    %c0 = arith.constant 0 : index
    %2 = memref.load %arg4[%c0] : memref<1xi32, #tpu.memory_space<smem>>
    %3 = arith.cmpi slt, %arg0, %2 : i32
    %c0_i32 = arith.constant 0 : i32
    %4 = arith.select %3, %arg1, %c0_i32 : i32
    %c0_i32_0 = arith.constant 0 : i32
    %c0_i32_1 = arith.constant 0 : i32
    return %1, %c0_i32_0, %4 : i32, i32, i32
  }
  func.func @transform_3(%arg0: i32, %arg1: i32, %arg2: memref<9xi32, #tpu.memory_space<smem>>, %arg3: memref<9xi32, #tpu.memory_space<smem>>, %arg4: memref<1xi32, #tpu.memory_space<smem>>) -> (i32, i32, i32) {
    %0 = arith.index_cast %arg0 : i32 to index
    %1 = memref.load %arg3[%0] : memref<9xi32, #tpu.memory_space<smem>>
    %c0 = arith.constant 0 : index
    %2 = memref.load %arg4[%c0] : memref<1xi32, #tpu.memory_space<smem>>
    %3 = arith.cmpi slt, %arg0, %2 : i32
    %c0_i32 = arith.constant 0 : i32
    %4 = arith.select %3, %arg1, %c0_i32 : i32
    %c0_i32_0 = arith.constant 0 : i32
    %c0_i32_1 = arith.constant 0 : i32
    return %1, %4, %c0_i32_0 : i32, i32, i32
  }
  func.func @transform_4(%arg0: i32, %arg1: i32, %arg2: memref<9xi32, #tpu.memory_space<smem>>, %arg3: memref<9xi32, #tpu.memory_space<smem>>, %arg4: memref<1xi32, #tpu.memory_space<smem>>) -> (i32, i32) {
    %0 = arith.index_cast %arg0 : i32 to index
    %1 = memref.load %arg2[%0] : memref<9xi32, #tpu.memory_space<smem>>
    %c0_i32 = arith.constant 0 : i32
    %c0_i32_0 = arith.constant 0 : i32
    return %1, %c0_i32 : i32, i32
  }
}

</mosaic_0001>

<llo_original>
// kernel: custom-call.3
$region0: #{custom-call.3}
  %s0 = inlined_call_operand.vmem [shape: u32[9], index: 0, kind: output, shape index: {}]

// kernel: _lambda_.4
$region0: #{_lambda_.4}
  #allocation0 [shape = 'u32[]', space=smem, size = 0x4, offset = 0x4, fixed_abs, tag = 'smem constant byte address 0x4 - core index']
  #allocation1 [shape = 'u32[72,128]{1,0:T(1,128)}', space=vmem, size = 0x9000, scoped, tag = 'internal scratch']
  %s0 = inlined_call_operand.vmem [shape: bf16[16,32], index: 0, kind: input, shape index: {}]
  %s1 = inlined_call_operand.vmem [shape: bf16[32,8], index: 1, kind: input, shape index: {}]
  %s2 = inlined_call_operand.vmem [shape: f32[16,8], index: 2, kind: output, shape index: {}]
  %s3 = sld [smem:[#allocation0]]
  $region18: #{_lambda_.4} parent=0
    _
  %s5 = ssub.s32 1, %s3
  %s6 = scalar_select 0, %s5, %s3
  // Predicated region
  $region2: #{_lambda_.4} parent=0 // pred_check
    _
  $region3: #{_lambda_.4} parent=0 // pred_check_branch
    %8 = sbr.rel (0) target = $region5
  $region4: #{_lambda_.4} parent=0 // pred_region
    _
  $region5: #{_lambda_.4} parent=0 // pred_fallthru
    _
  // Predicated region
  $region6: #{_lambda_.4} parent=0 // pred_check
    _
  $region7: #{_lambda_.4} parent=0 // pred_check_branch
    %10 = sbr.rel (0) target = $region9
  $region8: #{_lambda_.4} parent=0 // pred_region
    _
  $region9: #{_lambda_.4} parent=0 // pred_fallthru
    _
  %v12 = vld [vmem:[%s0] sm:$0xf]
  %v13 = vld [vmem:[%s0 + $0x4] sm:$0xf]
  %v14 = vld [vmem:[%s1] sm:$0xf]
  %v15 = vld [vmem:[%s1 + $0x4] sm:$0xf]
  %v16 = vld [vmem:[%s1 + $0x8] sm:$0xf]
  %v17 = vld [vmem:[%s1 + $0xc] sm:$0xf]
  %v20 = vunpack.c.l.b16 %v12
  %v21 = vunpack.c.l.b16 %v13
  %v22 = vpack.c.b16 %v21, %v20
  %v27 = vunpack.c.l.b16 %v14
  %v28 = vunpack.c.l.b16 %v15
  %v29 = vunpack.c.l.b16 %v16
  %v30 = vunpack.c.l.b16 %v17
  %v31 = vpack.c.b16 %v28, %v27
  %v32 = vpack.c.b16 %v30, %v29
  %vm35 = vcmask 261120
  %v37 = vsel %vm35, %v22, 0
  %39 = vmatpush.bf16.msra.mxu0 0
  %40 = vmatpush.bf16.msra.mxu0 0
  %41 = vmatpush.bf16.msra.mxu0 0
  %42 = vmatpush.bf16.msra.mxu0 0
  %43 = vmatpush.bf16.msra.mxu0 0
  %44 = vmatpush.bf16.msra.mxu0 0
  %45 = vmatpush.bf16.msra.mxu0 %v32
  %46 = vmatpush.bf16.msra.mxu0 %v31
  %47 = vmatmul.bf16.gmra.mxu0 %v37
  %v48 = vpop.f32.mrf.mxu0
  %v49 = vadd.f32 0.0, %v48
  %v50 = vpop.f32.mrf.mxu0
  %v51 = vadd.f32 0.0, %v50
  %52 = vdwg.mxu0
  %vm53 = vcmask 64512
  %54 = vst.msk [vmem:[%s2] sm:$0xff] %vm53, %v49
  %55 = vst.msk [vmem:[%s2 + $0x8] sm:$0xff] %vm53, %v51
  // Predicated region
  $region10: #{_lambda_.4} parent=0 // pred_check
    _
  $region11: #{_lambda_.4} parent=0 // pred_check_branch
    %57 = sbr.rel (0) target = $region13
  $region12: #{_lambda_.4} parent=0 // pred_region
    _
  $region13: #{_lambda_.4} parent=0 // pred_fallthru
    _
  // Predicated region
  $region14: #{_lambda_.4} parent=0 // pred_check
    _
  $region15: #{_lambda_.4} parent=0 // pred_check_branch
    %59 = sbr.rel (0) target = $region17
  $region16: #{_lambda_.4} parent=0 // pred_region
    _
  $region17: #{_lambda_.4} parent=0 // pred_fallthru
    _

// kernel: _lambda_.3
$region0: #{_lambda_.3}
  #allocation0 [shape = 'u32[]', space=smem, size = 0x4, offset = 0x4, fixed_abs, tag = 'smem constant byte address 0x4 - core index']
  #allocation1 [shape = 'u32[72,128]{1,0:T(1,128)}', space=vmem, size = 0x9000, scoped, tag = 'internal scratch']
  #allocation2 [shape = 'f32[16,32]{1,0:T(8,128)}', space=vmem, size = 0x2000, scoped, tag = 'scratch operand']
  %s0 = inlined_call_operand.vmem [shape: bf16[16,32], index: 0, kind: input, shape index: {}]
  %s1 = inlined_call_operand.vmem [shape: bf16[32,64], index: 1, kind: input, shape index: {}]
  %s2 = inlined_call_operand.vmem [shape: bf16[32,32], index: 2, kind: input, shape index: {}]
  %s3 = inlined_call_operand.vmem [shape: bf16[16,32], index: 3, kind: output, shape index: {}]
  %s4 = sld [smem:[#allocation0]]
  $region30: #{_lambda_.3} parent=0
    _
  %s6 = ssub.s32 1, %s4
  %s7 = scalar_select 0, %s6, %s4
  // Predicated region
  $region2: #{_lambda_.3} parent=0 // pred_check
    _
  $region3: #{_lambda_.3} parent=0 // pred_check_branch
    %9 = sbr.rel (0) target = $region5
  $region4: #{_lambda_.3} parent=0 // pred_region
    _
  $region5: #{_lambda_.3} parent=0 // pred_fallthru
    _
  // Predicated region
  $region6: #{_lambda_.3} parent=0 // pred_check
    _
  $region7: #{_lambda_.3} parent=0 // pred_check_branch
    %11 = sbr.rel (0) target = $region9
  $region8: #{_lambda_.3} parent=0 // pred_region
    _
  $region9: #{_lambda_.3} parent=0 // pred_fallthru
    _
  // Predicated region
  $region10: #{_lambda_.3} parent=0 // pred_check
    _
  $region11: #{_lambda_.3} parent=0 // pred_check_branch
    %13 = sbr.rel (0) target = $region13
  $region12: #{_lambda_.3} parent=0 // pred_region
    _
  $region13: #{_lambda_.3} parent=0 // pred_fallthru
    _
  %p15 = scmp.eq.s32.totalorder 0, 0
  // Predicated region
  $region14: #{_lambda_.3} parent=0 // pred_check
    %p16 = pneg %p15
  $region15: #{_lambda_.3} parent=0 // pred_check_branch
    %18 = sbr.rel (%p16) target = $region17
  $region16: #{_lambda_.3} parent=0 // pred_region
    %vm19 = vcmask 261120
    %20 = vst.msk [vmem:[#allocation2] sm:$0xff] %vm19, 0.0
    %21 = vst.msk [vmem:[#allocation2 + $0x8] sm:$0xff] %vm19, 0.0
  $region17: #{_lambda_.3} parent=0 // pred_fallthru
    _
  %v22 = vld [vmem:[%s0] sm:$0xf]
  %v23 = vld [vmem:[%s0 + $0x4] sm:$0xf]
  %v24 = vld [vmem:[%s1] sm:$0xf]
  %v25 = vld [vmem:[%s1 + $0x4] sm:$0xf]
  %v26 = vld [vmem:[%s1 + $0x8] sm:$0xf]
  %v27 = vld [vmem:[%s1 + $0xc] sm:$0xf]
  %v30 = vunpack.c.l.b16 %v22
  %v31 = vunpack.c.l.b16 %v23
  %v32 = vpack.c.b16 %v31, %v30
  %v37 = vunpack.c.l.b16 %v24
  %v38 = vunpack.c.l.b16 %v25
  %v39 = vunpack.c.l.b16 %v26
  %v40 = vunpack.c.l.b16 %v27
  %v41 = vpack.c.b16 %v38, %v37
  %v42 = vpack.c.b16 %v40, %v39
  %vm45 = vcmask 261120
  %v47 = vsel %vm45, %v32, 0
  %49 = vmatpush.bf16.msra.mxu0 0
  %50 = vmatpush.bf16.msra.mxu0 0
  %51 = vmatpush.bf16.msra.mxu0 0
  %52 = vmatpush.bf16.msra.mxu0 0
  %53 = vmatpush.bf16.msra.mxu0 0
  %54 = vmatpush.bf16.msra.mxu0 0
  %55 = vmatpush.bf16.msra.mxu0 %v42
  %56 = vmatpush.bf16.msra.mxu0 %v41
  %57 = vmatmul.bf16.gmra.mxu0 %v47
  %v58 = vpop.f32.mrf.mxu0
  %v59 = vadd.f32 0.0, %v58
  %v60 = vpop.f32.mrf.mxu0
  %v61 = vadd.f32 0.0, %v60
  %62 = vdwg.mxu0
  %v63 = vxor.u32 %v59, 2147483648
  %v64 = vxor.u32 %v61, 2147483648
  %v65 = vmul.f32 %v63, 1.442695
  %v66 = vpow.pop %v65
  %v67 = vmul.f32 %v64, 1.442695
  %v68 = vpow.pop %v67
  %v69 = vadd.f32 %v66, 1.0
  %v70 = vadd.f32 %v68, 1.0
  %v71 = vrcp.pop %v69
  %v72 = vmul.f32 %v69, %v71
  %v73 = vsub.f32 1.0, %v72
  %v74 = vmul.f32 %v71, %v73
  %v75 = vadd.f32 %v71, %v74
  %vm76 = vweird.f32 %v69
  %vm77 = vweird.f32 %v71
  %vm78 = vmor %vm76, %vm77
  %v79 = vsel %vm78, %v71, %v75
  %v80 = vand.u32 2147483647, %v69
  %vm81 = vcmp.eq.f32.partialorder %v80, 8.507059e+37
  %v82 = vand.u32 %v69, 2147483648
  %v83 = vor.u32 1.1754944e-38, %v82
  %v84 = vsel %vm81, %v83, %v79
  %v85 = vmul.f32 1.0, %v84
  %v86 = vrcp.pop %v70
  %v87 = vmul.f32 %v70, %v86
  %v88 = vsub.f32 1.0, %v87
  %v89 = vmul.f32 %v86, %v88
  %v90 = vadd.f32 %v86, %v89
  %vm91 = vweird.f32 %v70
  %vm92 = vweird.f32 %v86
  %vm93 = vmor %vm91, %vm92
  %v94 = vsel %vm93, %v86, %v90
  %v95 = vand.u32 2147483647, %v70
  %vm96 = vcmp.eq.f32.partialorder %v95, 8.507059e+37
  %v97 = vand.u32 %v70, 2147483648
  %v98 = vor.u32 1.1754944e-38, %v97
  %v99 = vsel %vm96, %v98, %v94
  %v100 = vmul.f32 1.0, %v99
  %v101 = vmul.f32 %v59, %v85
  %v102 = vmul.f32 %v61, %v100
  %105 = vrot.lane.b32.xlu0 %v59, 96
  %v106 = vpop.permute.xlu0 %105
  %107 = vrot.lane.b32.xlu0 %v61, 96
  %v108 = vpop.permute.xlu0 %107
  %v111 = vmul.f32 %v101, %v106
  %v112 = vmul.f32 %v102, %v108
  %v113 = vld [vmem:[#allocation2] sm:$0xff]
  %v114 = vld [vmem:[#allocation2 + $0x8] sm:$0xff]
  %v115 = vpack.c.bf16 %v112, %v111
  %v116 = vld [vmem:[%s2] sm:$0xf]
  %v117 = vld [vmem:[%s2 + $0x4] sm:$0xf]
  %v118 = vld [vmem:[%s2 + $0x8] sm:$0xf]
  %v119 = vld [vmem:[%s2 + $0xc] sm:$0xf]
  %v124 = vunpack.c.l.b16 %v116
  %v125 = vunpack.c.l.b16 %v117
  %v126 = vunpack.c.l.b16 %v118
  %v127 = vunpack.c.l.b16 %v119
  %v128 = vpack.c.b16 %v125, %v124
  %v129 = vpack.c.b16 %v127, %v126
  %v133 = vsel %vm45, %v115, 0
  %135 = vmatpush.bf16.msra.mxu0 0
  %136 = vmatpush.bf16.msra.mxu0 0
  %137 = vmatpush.bf16.msra.mxu0 0
  %138 = vmatpush.bf16.msra.mxu0 0
  %139 = vmatpush.bf16.msra.mxu0 0
  %140 = vmatpush.bf16.msra.mxu0 0
  %141 = vmatpush.bf16.msra.mxu0 %v129
  %142 = vmatpush.bf16.msra.mxu0 %v128
  %143 = vmatmul.bf16.gmra.mxu0 %v133
  %v144 = vpop.f32.mrf.mxu0
  %v145 = vadd.f32 0.0, %v144
  %v146 = vpop.f32.mrf.mxu0
  %v147 = vadd.f32 0.0, %v146
  %148 = vdwg.mxu0
  %v149 = vadd.f32 %v113, %v145
  %v150 = vadd.f32 %v114, %v147
  %151 = vst.msk [vmem:[#allocation2] sm:$0xff] %vm45, %v149
  %152 = vst.msk [vmem:[#allocation2 + $0x8] sm:$0xff] %vm45, %v150
  // Predicated region
  $region18: #{_lambda_.3} parent=0 // pred_check
    %p153 = pneg %p15
  $region19: #{_lambda_.3} parent=0 // pred_check_branch
    %155 = sbr.rel (%p153) target = $region21
  $region20: #{_lambda_.3} parent=0 // pred_region
    %v156 = vld [vmem:[#allocation2] sm:$0xff]
    %v157 = vld [vmem:[#allocation2 + $0x8] sm:$0xff]
    %v158 = vpack.c.bf16 %v156, %v156
    %v159 = vpack.c.bf16 %v157, %v157
    %vm160 = vcmask 257024
    %161 = vst.msk [vmem:[%s3] sm:$0xf] %vm160, %v158
    %162 = vst.msk [vmem:[%s3 + $0x4] sm:$0xf] %vm160, %v159
  $region21: #{_lambda_.3} parent=0 // pred_fallthru
    _
  // Predicated region
  $region22: #{_lambda_.3} parent=0 // pred_check
    _
  $region23: #{_lambda_.3} parent=0 // pred_check_branch
    %164 = sbr.rel (0) target = $region25
  $region24: #{_lambda_.3} parent=0 // pred_region
    _
  $region25: #{_lambda_.3} parent=0 // pred_fallthru
    _
  // Predicated region
  $region26: #{_lambda_.3} parent=0 // pred_check
    _
  $region27: #{_lambda_.3} parent=0 // pred_check_branch
    %166 = sbr.rel (0) target = $region29
  $region28: #{_lambda_.3} parent=0 // pred_region
    _
  $region29: #{_lambda_.3} parent=0 // pred_fallthru
    _

// kernel: _lambda_.5
$region0: #{_lambda_.5}
  #allocation0 [shape = 'u32[]', space=smem, size = 0x4, offset = 0x4, fixed_abs, tag = 'smem constant byte address 0x4 - core index']
  #allocation1 [shape = 'u32[72,128]{1,0:T(1,128)}', space=vmem, size = 0x9000, scoped, tag = 'internal scratch']
  #allocation2 [shape = 'f32[16,32]{1,0:T(8,128)}', space=vmem, size = 0x2000, scoped, tag = 'scratch operand']
  #allocation3 [shape = 's32[1]{0}', space=sflag, size = 0x4, scoped, tag = 'scoped memory for _lambda_.5']
  #allocation4 [shape = 'u8[512]{0}', space=smem, size = 0x200, scoped, tag = 'prefetched SMEM operand 0']
  #allocation5 [shape = 'u8[512]{0}', space=smem, size = 0x200, scoped, tag = 'prefetched SMEM operand 1']
  #allocation6 [shape = 's32[1]{0:T(128)S(6)}', space=smem, size = 0x200, scoped, tag = 'prefetched SMEM operand 2']
  %s0 = inlined_call_operand.vmem [shape: s32[9], index: 0, kind: input, shape index: {}]
  %s1 = inlined_call_operand.vmem [shape: s32[9], index: 1, kind: input, shape index: {}]
  %s2 = inlined_call_operand.<no memory space> [shape: s32[1], index: 2, kind: input, shape index: {}]
  %s3 = inlined_call_operand.vmem [shape: bf16[144,32], index: 3, kind: input, shape index: {}]
  %s4 = inlined_call_operand.vmem [shape: f32[144,1], index: 4, kind: input, shape index: {}]
  %s5 = inlined_call_operand.vmem [shape: bf16[8,32,32], index: 5, kind: input, shape index: {}]
  %s6 = inlined_call_operand.vmem [shape: bf16[8,16,32], index: 6, kind: input, shape index: {}]
  %s7 = inlined_call_operand.vmem [shape: f32[144,32], index: 7, kind: output, shape index: {}]
  %s8 = sld [smem:[#allocation0]]
  $region61: #{_lambda_.5} parent=0
    _
  %s10 = ssub.s32 1, %s8
  %s11 = scalar_select 0, %s10, %s8
  %s13 = sshll.u32 %s0, 4
  %s14 = int_to_ptr.vmem [resolvable:$true] %s13
  %16 = dma.vmem_to_smem %s14, 16, [#allocation4], [#allocation3]
  %s18 = sshll.u32 %s1, 4
  %s19 = int_to_ptr.vmem [resolvable:$true] %s18
  %21 = dma.vmem_to_smem %s19, 16, [#allocation5], [#allocation3]
  %22 = sst [smem:[#allocation6]] %s2
  %24 = dma.done [#allocation3], 32
  %25 = sfence
  loop: start=0, step=1, limit=11
  $region2: #{_lambda_.5} parent=0 // loop_pre_header
    _
  $region3: #{_lambda_.5} parent=0 // loop_header
    %s27 = sphi 0, %s31
    %p28 = scmp.ge.s32.totalorder %s27, 11
    %s34 = sphi 0, %s46
    %s35 = sphi 0, %s42
    %s36 = sphi 0, %s34
    %s37 = sphi 0, %s35
    %s38 = sphi 0, %s36
    %s39 = sphi 0, %s37
    %s51 = sphi 0, %s53
    %s54 = sphi 0, %s51
    %s55 = sphi 0, %s54
    %s71 = sphi 0, %s55
    %s79 = sphi 0, %s81
    %s82 = sphi 0, %s79
    %s83 = sphi 0, %s82
    %s99 = sphi 0, %s83
    %s115 = sphi 0, %s117
    %s118 = sphi 0, %s115
    %s119 = sphi 0, %s118
    %s135 = sphi 0, %s119
    %s151 = sphi 0, %s153
    %s154 = sphi 0, %s151
    %s155 = sphi 0, %s154
    %s171 = sphi 0, %s155
    %s179 = sphi 0, %s181
    %s182 = sphi 0, %s179
    %s183 = sphi 0, %s182
    %s199 = sphi 0, %s183
  $region4: #{_lambda_.5} parent=0 // loop_header_branch
    %30 = sbr.rel (%p28) target = $region8
  $region5: #{_lambda_.5} parent=0 // loop_body
    %s32 = ssub.s32 %s27, 1
    %s33 = ssub.s32 %s27, 2
    %s40 = sadd.s32 1, %s35
    %p41 = scmp.ge.s32.totalorder %s40, 1
    %s42 = scalar_select %p41, 0, %s40
    %s43 = sadd.s32 1, %s34
    %s44 = scalar_select %p41, %s43, %s34
    %p45 = scmp.ge.s32.totalorder %s44, 9
    %s46 = scalar_select %p45, 0, %s44
    %s47 = sld [smem:[#allocation4 + %s34]]
    %s48 = sld [smem:[#allocation4 + %s46]]
    %s49 = ssub.s32 %s47, %s48
    %p50 = scmp.eq.s32.totalorder %s49, 0
    %s52 = sadd.s32 %s51, 1
    %s53 = scalar_select %p50, %s51, %s52
    %p56 = pneg %p50
    %p57 = scmp.eq.s32.totalorder %s27, 8
    %p58 = por %p56, %p57
    %p59 = scmp.ne.s32.totalorder %s51, %s54
    %p60 = scmp.eq.s32.totalorder %s27, 0
    %p61 = por %p59, %p60
    %p62 = scmp.ne.s32.totalorder %s51, %s54
    %p63 = scmp.eq.s32.totalorder %s32, 8
    %p64 = por %p62, %p63
    %p65 = scmp.ne.s32.totalorder %s54, %s55
    %p66 = scmp.eq.s32.totalorder %s32, 0
    %p67 = por %p65, %p66
    %p68 = scmp.ne.s32.totalorder %s54, %s55
    %p69 = scmp.eq.s32.totalorder %s33, 8
    %p70 = por %p68, %p69
    %p72 = scmp.ne.s32.totalorder %s55, %s71
    %p73 = scmp.eq.s32.totalorder %s33, 0
    %p74 = por %p72, %p73
    %s75 = sld [smem:[#allocation4 + %s34]]
    %s76 = sld [smem:[#allocation4 + %s46]]
    %s77 = ssub.s32 %s75, %s76
    %p78 = scmp.eq.s32.totalorder %s77, 0
    %s80 = sadd.s32 %s79, 1
    %s81 = scalar_select %p78, %s79, %s80
    %p84 = pneg %p78
    %p85 = scmp.eq.s32.totalorder %s27, 8
    %p86 = por %p84, %p85
    %p87 = scmp.ne.s32.totalorder %s79, %s82
    %p88 = scmp.eq.s32.totalorder %s27, 0
    %p89 = por %p87, %p88
    %p90 = scmp.ne.s32.totalorder %s79, %s82
    %p91 = scmp.eq.s32.totalorder %s32, 8
    %p92 = por %p90, %p91
    %p93 = scmp.ne.s32.totalorder %s82, %s83
    %p94 = scmp.eq.s32.totalorder %s32, 0
    %p95 = por %p93, %p94
    %p96 = scmp.ne.s32.totalorder %s82, %s83
    %p97 = scmp.eq.s32.totalorder %s33, 8
    %p98 = por %p96, %p97
    %p100 = scmp.ne.s32.totalorder %s83, %s99
    %p101 = scmp.eq.s32.totalorder %s33, 0
    %p102 = por %p100, %p101
    %s103 = sld [smem:[#allocation5 + %s34]]
    %s104 = sld [smem:[#allocation6]]
    %p105 = scmp.lt.s32.totalorder %s34, %s104
    %s106 = scalar_select %p105, %s35, 0
    %s107 = sld [smem:[#allocation5 + %s46]]
    %s108 = sld [smem:[#allocation6]]
    %p109 = scmp.lt.s32.totalorder %s46, %s108
    %s110 = scalar_select %p109, %s42, 0
    %s111 = ssub.s32 %s103, %s107
    %s112 = ssub.s32 %s106, %s110
    %s113 = sor.u32 %s111, %s112
    %p114 = scmp.eq.s32.totalorder %s113, 0
    %s116 = sadd.s32 %s115, 1
    %s117 = scalar_select %p114, %s115, %s116
    %p120 = pneg %p114
    %p121 = scmp.eq.s32.totalorder %s27, 8
    %p122 = por %p120, %p121
    %p123 = scmp.ne.s32.totalorder %s115, %s118
    %p124 = scmp.eq.s32.totalorder %s27, 0
    %p125 = por %p123, %p124
    %p126 = scmp.ne.s32.totalorder %s115, %s118
    %p127 = scmp.eq.s32.totalorder %s32, 8
    %p128 = por %p126, %p127
    %p129 = scmp.ne.s32.totalorder %s118, %s119
    %p130 = scmp.eq.s32.totalorder %s32, 0
    %p131 = por %p129, %p130
    %p132 = scmp.ne.s32.totalorder %s118, %s119
    %p133 = scmp.eq.s32.totalorder %s33, 8
    %p134 = por %p132, %p133
    %p136 = scmp.ne.s32.totalorder %s119, %s135
    %p137 = scmp.eq.s32.totalorder %s33, 0
    %p138 = por %p136, %p137
    %s139 = sld [smem:[#allocation5 + %s34]]
    %s140 = sld [smem:[#allocation6]]
    %p141 = scmp.lt.s32.totalorder %s34, %s140
    %s142 = scalar_select %p141, %s35, 0
    %s143 = sld [smem:[#allocation5 + %s46]]
    %s144 = sld [smem:[#allocation6]]
    %p145 = scmp.lt.s32.totalorder %s46, %s144
    %s146 = scalar_select %p145, %s42, 0
    %s147 = ssub.s32 %s139, %s143
    %s148 = ssub.s32 %s142, %s146
    %s149 = sor.u32 %s147, %s148
    %p150 = scmp.eq.s32.totalorder %s149, 0
    %s152 = sadd.s32 %s151, 1
    %s153 = scalar_select %p150, %s151, %s152
    %p156 = pneg %p150
    %p157 = scmp.eq.s32.totalorder %s27, 8
    %p158 = por %p156, %p157
    %p159 = scmp.ne.s32.totalorder %s151, %s154
    %p160 = scmp.eq.s32.totalorder %s27, 0
    %p161 = por %p159, %p160
    %p162 = scmp.ne.s32.totalorder %s151, %s154
    %p163 = scmp.eq.s32.totalorder %s32, 8
    %p164 = por %p162, %p163
    %p165 = scmp.ne.s32.totalorder %s154, %s155
    %p166 = scmp.eq.s32.totalorder %s32, 0
    %p167 = por %p165, %p166
    %p168 = scmp.ne.s32.totalorder %s154, %s155
    %p169 = scmp.eq.s32.totalorder %s33, 8
    %p170 = por %p168, %p169
    %p172 = scmp.ne.s32.totalorder %s155, %s171
    %p173 = scmp.eq.s32.totalorder %s33, 0
    %p174 = por %p172, %p173
    %s175 = sld [smem:[#allocation4 + %s34]]
    %s176 = sld [smem:[#allocation4 + %s46]]
    %s177 = ssub.s32 %s175, %s176
    %p178 = scmp.eq.s32.totalorder %s177, 0
    %s180 = sadd.s32 %s179, 1
    %s181 = scalar_select %p178, %s179, %s180
    %p184 = pneg %p178
    %p185 = scmp.eq.s32.totalorder %s27, 8
    %p186 = por %p184, %p185
    %p187 = scmp.ne.s32.totalorder %s179, %s182
    %p188 = scmp.eq.s32.totalorder %s27, 0
    %p189 = por %p187, %p188
    %p190 = scmp.ne.s32.totalorder %s179, %s182
    %p191 = scmp.eq.s32.totalorder %s32, 8
    %p192 = por %p190, %p191
    %p193 = scmp.ne.s32.totalorder %s182, %s183
    %p194 = scmp.eq.s32.totalorder %s32, 0
    %p195 = por %p193, %p194
    %p196 = scmp.ne.s32.totalorder %s182, %s183
    %p197 = scmp.eq.s32.totalorder %s33, 8
    %p198 = por %p196, %p197
    %p200 = scmp.ne.s32.totalorder %s183, %s199
    %p201 = scmp.eq.s32.totalorder %s33, 0
    %p202 = por %p200, %p201
    %p203 = scmp.le.s32.totalorder 1, %s27
    %p204 = scmp.lt.s32.totalorder %s27, 10
    %p205 = pnand %p203, %p204
    %p206 = pneg %p205
    // Predicated region
    $region9: #{_lambda_.5} parent=5 // pred_check
      _
    $region10: #{_lambda_.5} parent=5 // pred_check_branch
      %208 = sbr.rel (%p205) target = $region12
    $region11: #{_lambda_.5} parent=5 // pred_region
      %s209 = ssub.s32 %s27, 1
    $region12: #{_lambda_.5} parent=5 // pred_fallthru
      _
    %p210 = scmp.lt.s32.totalorder %s27, 9
    // Predicated region
    $region13: #{_lambda_.5} parent=5 // pred_check
      %p211 = pneg %p210
    $region14: #{_lambda_.5} parent=5 // pred_check_branch
      %213 = sbr.rel (%p211) target = $region16
    $region15: #{_lambda_.5} parent=5 // pred_region
      // Predicated region
      $region17: #{_lambda_.5} parent=15 // pred_check
        %p214 = pneg %p61
      $region18: #{_lambda_.5} parent=15 // pred_check_branch
        %216 = sbr.rel (%p214) target = $region20
      $region19: #{_lambda_.5} parent=15 // pred_region
        %s217 = sld [smem:[#allocation4 + %s34]]
        %s218 = smul.u32 2, %s217
        %p219 = scmp.lt.s32.totalorder %s218, 17
        %s220 = scalar_select %p219, %s218, 17
        %s221 = smul.addr %s220, 4
        %s222 = scalar_lea.vmem %s3, %s221
        %s223 = sld [smem:[#allocation4 + %s34]]
        %s224 = smul.u32 2, %s223
      $region20: #{_lambda_.5} parent=15 // pred_fallthru
        _
      // Predicated region
      $region21: #{_lambda_.5} parent=15 // pred_check
        %p225 = pneg %p89
      $region22: #{_lambda_.5} parent=15 // pred_check_branch
        %227 = sbr.rel (%p225) target = $region24
      $region23: #{_lambda_.5} parent=15 // pred_region
        %s228 = sld [smem:[#allocation4 + %s34]]
        %s229 = smul.u32 2, %s228
        %p230 = scmp.lt.s32.totalorder %s229, 17
        %s231 = scalar_select %p230, %s229, 17
        %s232 = smul.addr %s231, 8
        %s233 = scalar_lea.vmem %s4, %s232
        %s234 = sld [smem:[#allocation4 + %s34]]
        %s235 = smul.u32 2, %s234
      $region24: #{_lambda_.5} parent=15 // pred_fallthru
        _
      // Predicated region
      $region25: #{_lambda_.5} parent=15 // pred_check
        %p236 = pneg %p125
      $region26: #{_lambda_.5} parent=15 // pred_check_branch
        %238 = sbr.rel (%p236) target = $region28
      $region27: #{_lambda_.5} parent=15 // pred_region
        %s239 = sld [smem:[#allocation5 + %s34]]
        %s240 = sld [smem:[#allocation6]]
        %p241 = scmp.lt.s32.totalorder %s34, %s240
        %s242 = scalar_select %p241, %s35, 0
        %p243 = scmp.lt.s32.totalorder %s239, 7
        %s244 = scalar_select %p243, %s239, 7
        %p245 = scmp.lt.s32.totalorder %s242, 0
        %s246 = scalar_select %p245, %s242, 0
        %s247 = smul.addr %s244, 4
        %s248 = sadd.s32 %s246, %s247
        %s249 = smul.addr %s248, 4
        %s250 = scalar_lea.vmem %s5, %s249
        %s251 = sld [smem:[#allocation5 + %s34]]
        %s252 = sld [smem:[#allocation6]]
        %p253 = scmp.lt.s32.totalorder %s34, %s252
        %s254 = scalar_select %p253, %s35, 0
      $region28: #{_lambda_.5} parent=15 // pred_fallthru
        _
      // Predicated region
      $region29: #{_lambda_.5} parent=15 // pred_check
        %p255 = pneg %p161
      $region30: #{_lambda_.5} parent=15 // pred_check_branch
        %257 = sbr.rel (%p255) target = $region32
      $region31: #{_lambda_.5} parent=15 // pred_region
        %s258 = sld [smem:[#allocation5 + %s34]]
        %s259 = sld [smem:[#allocation6]]
        %p260 = scmp.lt.s32.totalorder %s34, %s259
        %s261 = scalar_select %p260, %s35, 0
        %s262 = smul.u32 2, %s261
        %p263 = scmp.lt.s32.totalorder %s258, 7
        %s264 = scalar_select %p263, %s258, 7
        %p265 = scmp.lt.s32.totalorder %s262, 1
        %s266 = scalar_select %p265, %s262, 1
        %s267 = smul.addr %s264, 2
        %s268 = sadd.s32 %s266, %s267
        %s269 = smul.addr %s268, 4
        %s270 = scalar_lea.vmem %s6, %s269
        %s271 = sld [smem:[#allocation5 + %s34]]
        %s272 = sld [smem:[#allocation6]]
        %p273 = scmp.lt.s32.totalorder %s34, %s272
        %s274 = scalar_select %p273, %s35, 0
        %s275 = smul.u32 2, %s274
      $region32: #{_lambda_.5} parent=15 // pred_fallthru
        _
    $region16: #{_lambda_.5} parent=5 // pred_fallthru
      _
    %p276 = scmp.le.s32.totalorder 1, %s27
    %p277 = scmp.lt.s32.totalorder %s27, 10
    %p278 = pnand %p276, %p277
    %p279 = pneg %p278
    // Predicated region
    $region33: #{_lambda_.5} parent=5 // pred_check
      _
    $region34: #{_lambda_.5} parent=5 // pred_check_branch
      %281 = sbr.rel (%p278) target = $region36
    $region35: #{_lambda_.5} parent=5 // pred_region
      %s282 = ssub.s32 %s27, 1
      %s283 = sld [smem:[#allocation4 + %s36]]
      %s284 = smul.u32 2, %s283
      %p285 = scmp.lt.s32.totalorder %s284, 17
      %s286 = scalar_select %p285, %s284, 17
      %s287 = smul.addr %s286, 4
      %s288 = scalar_lea.vmem %s3, %s287
      %p289 = pneg %p67
      %p290 = pneg %p64
      %s291 = sld [smem:[#allocation4 + %s36]]
      %s292 = smul.u32 2, %s291
      %p293 = scmp.lt.s32.totalorder %s292, 17
      %s294 = scalar_select %p293, %s292, 17
      %s295 = smul.addr %s294, 8
      %s296 = scalar_lea.vmem %s4, %s295
      %p297 = pneg %p95
      %p298 = pneg %p92
      %s299 = sld [smem:[#allocation5 + %s36]]
      %s300 = sld [smem:[#allocation6]]
      %p301 = scmp.lt.s32.totalorder %s36, %s300
      %s302 = scalar_select %p301, %s37, 0
      %p303 = scmp.lt.s32.totalorder %s299, 7
      %s304 = scalar_select %p303, %s299, 7
      %p305 = scmp.lt.s32.totalorder %s302, 0
      %s306 = scalar_select %p305, %s302, 0
      %s307 = smul.addr %s304, 4
      %s308 = sadd.s32 %s306, %s307
      %s309 = smul.addr %s308, 4
      %s310 = scalar_lea.vmem %s5, %s309
      %p311 = pneg %p131
      %p312 = pneg %p128
      %s313 = sld [smem:[#allocation5 + %s36]]
      %s314 = sld [smem:[#allocation6]]
      %p315 = scmp.lt.s32.totalorder %s36, %s314
      %s316 = scalar_select %p315, %s37, 0
      %s317 = smul.u32 2, %s316
      %p318 = scmp.lt.s32.totalorder %s313, 7
      %s319 = scalar_select %p318, %s313, 7
      %p320 = scmp.lt.s32.totalorder %s317, 1
      %s321 = scalar_select %p320, %s317, 1
      %s322 = smul.addr %s319, 2
      %s323 = sadd.s32 %s321, %s322
      %s324 = smul.addr %s323, 4
      %s325 = scalar_lea.vmem %s6, %s324
      %p326 = pneg %p167
      %p327 = pneg %p164
      %p328 = pneg %p195
      %p329 = pneg %p192
      %s330 = sld [smem:[#allocation4 + %s36]]
      %s331 = smul.u32 2, %s330
      %p332 = scmp.lt.s32.totalorder %s331, 17
      %s333 = scalar_select %p332, %s331, 17
      %s334 = smul.addr %s333, 8
      %s335 = scalar_lea.vmem %s7, %s334
      %s336 = sld [smem:[#allocation4 + %s36]]
      %s337 = smul.u32 2, %s336
      %p338 = scmp.lt.s32.totalorder %s337, 17
      %s339 = scalar_select %p338, %s337, 17
      %s340 = smul.addr %s339, 4
      %s341 = scalar_lea.vmem %s3, %s340
      %s342 = sld [smem:[#allocation4 + %s36]]
      %s343 = smul.u32 2, %s342
      %s344 = sld [smem:[#allocation4 + %s36]]
      %s345 = smul.u32 2, %s344
      %p346 = scmp.lt.s32.totalorder %s345, 17
      %s347 = scalar_select %p346, %s345, 17
      %s348 = smul.addr %s347, 8
      %s349 = scalar_lea.vmem %s4, %s348
      %s350 = sld [smem:[#allocation4 + %s36]]
      %s351 = smul.u32 2, %s350
      %s352 = sld [smem:[#allocation5 + %s36]]
      %s353 = sld [smem:[#allocation6]]
      %p354 = scmp.lt.s32.totalorder %s36, %s353
      %s355 = scalar_select %p354, %s37, 0
      %p356 = scmp.lt.s32.totalorder %s352, 7
      %s357 = scalar_select %p356, %s352, 7
      %p358 = scmp.lt.s32.totalorder %s355, 0
      %s359 = scalar_select %p358, %s355, 0
      %s360 = smul.addr %s357, 4
      %s361 = sadd.s32 %s359, %s360
      %s362 = smul.addr %s361, 4
      %s363 = scalar_lea.vmem %s5, %s362
      %s364 = sld [smem:[#allocation5 + %s36]]
      %s365 = sld [smem:[#allocation6]]
      %p366 = scmp.lt.s32.totalorder %s36, %s365
      %s367 = scalar_select %p366, %s37, 0
      %s368 = sld [smem:[#allocation5 + %s36]]
      %s369 = sld [smem:[#allocation6]]
      %p370 = scmp.lt.s32.totalorder %s36, %s369
      %s371 = scalar_select %p370, %s37, 0
      %s372 = smul.u32 2, %s371
      %p373 = scmp.lt.s32.totalorder %s368, 7
      %s374 = scalar_select %p373, %s368, 7
      %p375 = scmp.lt.s32.totalorder %s372, 1
      %s376 = scalar_select %p375, %s372, 1
      %s377 = smul.addr %s374, 2
      %s378 = sadd.s32 %s376, %s377
      %s379 = smul.addr %s378, 4
      %s380 = scalar_lea.vmem %s6, %s379
      %s381 = sld [smem:[#allocation5 + %s36]]
      %s382 = sld [smem:[#allocation6]]
      %p383 = scmp.lt.s32.totalorder %s36, %s382
      %s384 = scalar_select %p383, %s37, 0
      %s385 = smul.u32 2, %s384
      %s386 = sld [smem:[#allocation4 + %s36]]
      %s387 = smul.u32 2, %s386
      %p388 = scmp.lt.s32.totalorder %s387, 17
      %s389 = scalar_select %p388, %s387, 17
      %s390 = smul.addr %s389, 8
      %s391 = scalar_lea.vmem %s7, %s390
      %s392 = sld [smem:[#allocation4 + %s36]]
      %s393 = smul.u32 2, %s392
      %s395 = sld [smem:[#allocation6]]
      %p396 = scmp.lt.s32.totalorder %s36, %s395
      %p397 = scmp.eq.s32.totalorder %s37, 0
      %p398 = pnand %p396, %p397
      %p399 = pneg %p398
      // Predicated region
      $region37: #{_lambda_.5} parent=35 // pred_check
        _
      $region38: #{_lambda_.5} parent=35 // pred_check_branch
        %401 = sbr.rel (%p398) target = $region40
      $region39: #{_lambda_.5} parent=35 // pred_region
        %vm402 = vcmask 261120
        %403 = vst.msk [vmem:[#allocation2] sm:$0xff] %vm402, 0.0
        %404 = vst.msk [vmem:[#allocation2 + $0x8] sm:$0xff] %vm402, 0.0
      $region40: #{_lambda_.5} parent=35 // pred_fallthru
        _
      // Predicated region
      $region41: #{_lambda_.5} parent=35 // pred_check
        %p405 = pneg %p396
      $region42: #{_lambda_.5} parent=35 // pred_check_branch
        %407 = sbr.rel (%p405) target = $region44
      $region43: #{_lambda_.5} parent=35 // pred_region
        %v408 = vld [vmem:[%s341] sm:$0xf]
        %v409 = vld [vmem:[%s341 + $0x4] sm:$0xf]
        %v410 = vld [vmem:[%s363] sm:$0xf]
        %v411 = vld [vmem:[%s363 + $0x4] sm:$0xf]
        %v412 = vld [vmem:[%s363 + $0x8] sm:$0xf]
        %v413 = vld [vmem:[%s363 + $0xc] sm:$0xf]
        %v416 = vunpack.c.l.b16 %v408
        %v417 = vunpack.c.l.b16 %v409
        %v418 = vpack.c.b16 %v417, %v416
        %v423 = vunpack.c.l.b16 %v410
        %v424 = vunpack.c.l.b16 %v411
        %v425 = vunpack.c.l.b16 %v412
        %v426 = vunpack.c.l.b16 %v413
        %v427 = vpack.c.b16 %v424, %v423
        %v428 = vpack.c.b16 %v426, %v425
        %vm431 = vcmask 261120
        %v433 = vsel %vm431, %v418, 0
        %435 = vmatpush.bf16.msra.mxu0 0
        %436 = vmatpush.bf16.msra.mxu0 0
        %437 = vmatpush.bf16.msra.mxu0 0
        %438 = vmatpush.bf16.msra.mxu0 0
        %439 = vmatpush.bf16.msra.mxu0 0
        %440 = vmatpush.bf16.msra.mxu0 0
        %441 = vmatpush.bf16.msra.mxu0 %v428
        %442 = vmatpush.bf16.msra.mxu0 %v427
        %443 = vmatmul.bf16.gmra.mxu0 %v433
        %v444 = vpop.f32.mrf.mxu0
        %v445 = vadd.f32 0.0, %v444
        %v446 = vpop.f32.mrf.mxu0
        %v447 = vadd.f32 0.0, %v446
        %448 = vdwg.mxu0
        %v449 = vxor.u32 %v445, 2147483648
        %v450 = vxor.u32 %v447, 2147483648
        %v451 = vmul.f32 %v449, 1.442695
        %v452 = vpow.pop %v451
        %v453 = vmul.f32 %v450, 1.442695
        %v454 = vpow.pop %v453
        %v455 = vadd.f32 %v452, 1.0
        %v456 = vadd.f32 %v454, 1.0
        %v457 = vrcp.pop %v455
        %v458 = vmul.f32 %v455, %v457
        %v459 = vsub.f32 1.0, %v458
        %v460 = vmul.f32 %v457, %v459
        %v461 = vadd.f32 %v457, %v460
        %vm462 = vweird.f32 %v455
        %vm463 = vweird.f32 %v457
        %vm464 = vmor %vm462, %vm463
        %v465 = vsel %vm464, %v457, %v461
        %v466 = vand.u32 2147483647, %v455
        %vm467 = vcmp.eq.f32.partialorder %v466, 8.507059e+37
        %v468 = vand.u32 %v455, 2147483648
        %v469 = vor.u32 1.1754944e-38, %v468
        %v470 = vsel %vm467, %v469, %v465
        %v471 = vmul.f32 1.0, %v470
        %v472 = vrcp.pop %v456
        %v473 = vmul.f32 %v456, %v472
        %v474 = vsub.f32 1.0, %v473
        %v475 = vmul.f32 %v472, %v474
        %v476 = vadd.f32 %v472, %v475
        %vm477 = vweird.f32 %v456
        %vm478 = vweird.f32 %v472
        %vm479 = vmor %vm477, %vm478
        %v480 = vsel %vm479, %v472, %v476
        %v481 = vand.u32 2147483647, %v456
        %vm482 = vcmp.eq.f32.partialorder %v481, 8.507059e+37
        %v483 = vand.u32 %v456, 2147483648
        %v484 = vor.u32 1.1754944e-38, %v483
        %v485 = vsel %vm482, %v484, %v480
        %v486 = vmul.f32 1.0, %v485
        %v487 = vmul.f32 %v445, %v471
        %v488 = vmul.f32 %v447, %v486
        %491 = vrot.lane.b32.xlu0 %v445, 112
        %v492 = vpop.permute.xlu0 %491
        %493 = vrot.lane.b32.xlu0 %v447, 112
        %v494 = vpop.permute.xlu0 %493
        %v497 = vmul.f32 %v487, %v492
        %v498 = vmul.f32 %v488, %v494
        %v499 = vld [vmem:[%s349] sm:$0xff]
        %v500 = vld [vmem:[%s349 + $0x8] sm:$0xff]
        %502 = vset.pattern.permute.xlu0 0
        %503 = vperm.xlu0 %502, %v499
        %v504 = vpop.permute.xlu0 %503
        %507 = vset.pattern.permute.xlu0 0
        %508 = vperm.xlu0 %507, %v500
        %v509 = vpop.permute.xlu0 %508
        %v511 = vmul.f32 %v497, %v504
        %v512 = vmul.f32 %v498, %v509
        %v513 = vpack.c.bf16 %v512, %v511
        %v514 = vld [vmem:[#allocation2] sm:$0xff]
        %v515 = vld [vmem:[#allocation2 + $0x8] sm:$0xff]
        %v516 = vld [vmem:[%s380] sm:$0xf]
        %v517 = vld [vmem:[%s380 + $0x4] sm:$0xf]
        %v520 = vunpack.c.l.b16 %v516
        %v521 = vunpack.c.l.b16 %v517
        %v522 = vpack.c.b16 %v521, %v520
        %vm524 = vcmask 130048
        %v526 = vsel %vm524, %v513, 0
        %528 = vmatpush.bf16.msra.mxu0 0
        %529 = vmatpush.bf16.msra.mxu0 0
        %530 = vmatpush.bf16.msra.mxu0 0
        %531 = vmatpush.bf16.msra.mxu0 0
        %532 = vmatpush.bf16.msra.mxu0 0
        %533 = vmatpush.bf16.msra.mxu0 0
        %534 = vmatpush.bf16.msra.mxu0 0
        %535 = vmatpush.bf16.msra.mxu0 %v522
        %536 = vmatmul.bf16.gmra.mxu0 %v526
        %v537 = vpop.f32.mrf.mxu0
        %v538 = vadd.f32 0.0, %v537
        %v539 = vpop.f32.mrf.mxu0
        %v540 = vadd.f32 0.0, %v539
        %541 = vdwg.mxu0
        %v542 = vadd.f32 %v514, %v538
        %v543 = vadd.f32 %v515, %v540
        %544 = vst.msk [vmem:[#allocation2] sm:$0xff] %vm431, %v542
        %545 = vst.msk [vmem:[#allocation2 + $0x8] sm:$0xff] %vm431, %v543
      $region44: #{_lambda_.5} parent=35 // pred_fallthru
        _
      // Predicated region
      $region45: #{_lambda_.5} parent=35 // pred_check
        _
      $region46: #{_lambda_.5} parent=35 // pred_check_branch
        %547 = sbr.rel (%p398) target = $region48
      $region47: #{_lambda_.5} parent=35 // pred_region
        %v548 = vld [vmem:[#allocation2] sm:$0xff]
        %v549 = vld [vmem:[#allocation2 + $0x8] sm:$0xff]
        %vm550 = vcmask 261120
        %551 = vst.msk [vmem:[%s391] sm:$0xff] %vm550, %v548
        %552 = vst.msk [vmem:[%s391 + $0x8] sm:$0xff] %vm550, %v549
      $region48: #{_lambda_.5} parent=35 // pred_fallthru
        _
      %s553 = sld [smem:[#allocation4 + %s36]]
      %s554 = smul.u32 2, %s553
      %p555 = scmp.lt.s32.totalorder %s554, 17
      %s556 = scalar_select %p555, %s554, 17
      %s557 = smul.addr %s556, 8
      %s558 = scalar_lea.vmem %s7, %s557
      // Predicated region
      $region49: #{_lambda_.5} parent=35 // pred_check
        %p559 = pneg %p192
      $region50: #{_lambda_.5} parent=35 // pred_check_branch
        %561 = sbr.rel (%p559) target = $region52
      $region51: #{_lambda_.5} parent=35 // pred_region
        %s562 = sld [smem:[#allocation4 + %s36]]
        %s563 = smul.u32 2, %s562
      $region52: #{_lambda_.5} parent=35 // pred_fallthru
        _
    $region36: #{_lambda_.5} parent=5 // pred_fallthru
      _
    %p564 = scmp.le.s32.totalorder 2, %s27
    // Predicated region
    $region53: #{_lambda_.5} parent=5 // pred_check
      %p565 = pneg %p564
    $region54: #{_lambda_.5} parent=5 // pred_check_branch
      %567 = sbr.rel (%p565) target = $region56
    $region55: #{_lambda_.5} parent=5 // pred_region
      %s568 = ssub.s32 %s27, 2
      // Predicated region
      $region57: #{_lambda_.5} parent=55 // pred_check
        %p569 = pneg %p198
      $region58: #{_lambda_.5} parent=55 // pred_check_branch
        %571 = sbr.rel (%p569) target = $region60
      $region59: #{_lambda_.5} parent=55 // pred_region
        %s572 = sld [smem:[#allocation4 + %s38]]
        %s573 = smul.u32 2, %s572
        %p574 = scmp.lt.s32.totalorder %s573, 17
        %s575 = scalar_select %p574, %s573, 17
        %s576 = smul.addr %s575, 8
        %s577 = scalar_lea.vmem %s7, %s576
      $region60: #{_lambda_.5} parent=55 // pred_fallthru
        _
    $region56: #{_lambda_.5} parent=5 // pred_fallthru
      _
  $region6: #{_lambda_.5} parent=0 // loop_footer
    %s31 = sadd.s32 1, %s27
  $region7: #{_lambda_.5} parent=0 // loop_footer_branch
    %26 = sbr.rel target = $region3
  $region8: #{_lambda_.5} parent=0 // loop_exit
    _

</llo_original>
